<compile_context>
chip_gen: v7x
topology: tpu7x:2x2x1
jax: 0.10.0
libtpu: 0.0.40
codegen_flags: <defaults>
</compile_context>

<pallas_src>
import math

import jax
import jax.numpy as jnp
from jax.experimental import pallas as pl
from jax.experimental.pallas import tpu as pltpu


def _sinusoidal_kernel(ts_ref, div_ref, phase_ref, out_ref):
    # ts_ref   : (TS, 1)  integer timestamps tile (rows on the sublane axis)
    # div_ref  : (1, D)   interleaved div_term (div[2i] == div[2i+1]), resident across grid
    # phase_ref: (1, D)   [0, pi/2, 0, pi/2, ...],                     resident across grid
    # out_ref  : (TS, D)  output tile
    pos = ts_ref[...].astype(jnp.float32)                    # (TS, 1)
    angle = pos * div_ref[...] + phase_ref[...]              # lane/sublane broadcast, FMA-able
    out_ref[...] = jnp.sin(angle).astype(out_ref.dtype)      # single transcendental chain


def sinusoidal_embedding(
    timestamps: jax.Array,
    d_model: int,
    *,
    out_dtype=jnp.float32,
) -> jax.Array:
    """timestamps: (batch, seq_len) integer array -> (batch, seq_len, d_model)."""
    assert d_model % 2 == 0, f"d_model must be even, got {d_model}"
    batch, seq_len = timestamps.shape
    total = batch * seq_len

    # Lane-dense output: pad D up to a multiple of 128 (padded lanes produce sin(0)=0 and
    # are sliced off below; the slice only costs an extra HBM pass when padding is needed).
    d_pad = ((d_model + 127) // 128) * 128

    # Hoisted constants (computed once per call, resident in VMEM across the whole grid).
    div_half = jnp.exp(
        jnp.arange(0, d_model, 2, dtype=jnp.float32) * (-(math.log(10000.0) / d_model))
    )                                                         # (D/2,)
    div_full = jnp.repeat(div_half, 2)                        # (D,)  div[2i] == div[2i+1]
    phase = jnp.tile(jnp.array([0.0, math.pi / 2.0], jnp.float32), d_model // 2)  # (D,)
    if d_pad != d_model:
        pad = d_pad - d_model
        div_full = jnp.pad(div_full, (0, pad))                # sin(0*t + 0) = 0 in padding
        phase = jnp.pad(phase, (0, pad))
    div_full = div_full.reshape(1, d_pad)
    phase = phase.reshape(1, d_pad)

    # --- tile sizing: generation-aware, accounts for out_dtype and f32 temporaries -------
    out_itemsize = jnp.dtype(out_dtype).itemsize
    try:
        vmem_bytes = int(pltpu.get_tpu_info().vmem_capacity_bytes)
    except Exception:
        vmem_bytes = 64 << 20      # conservative fallback (v7x per-TC physical VMEM)
    budget = vmem_bytes // 4       # working-set budget; leaves headroom for Mosaic scratch
    # per-row bytes: double-buffered output tile + ~3 block-sized f32 temporaries (angle etc.)
    per_row = d_pad * (2 * out_itemsize + 3 * 4)
    rows = max(8, (budget // per_row) // 8 * 8)               # multiple of 8 sublanes

    ts_rows = min(total, rows)
    if ts_rows < total:
        ts_rows = max(8, (ts_rows // 8) * 8)                  # already a multiple of 8
    elif total > 8:
        # Whole problem fits one tile: split into >=2 tiles so both v7x TensorCores get
        # work along the single "parallel" grid axis (negligible overhead on v5e/v6e).
        half_rows = (total + 1) // 2
        ts_rows = max(8, ((half_rows + 7) // 8) * 8)
    # else: total <= 8 -> single full-extent tile (always tiling-legal).

    vmem_limit = int(min(vmem_bytes // 2, 64 << 20))          # 64 MiB on v5e/v6e, 32 MiB on v7x

    ts_flat = timestamps.reshape(total, 1)
    grid = (pl.cdiv(total, ts_rows),)

    out = pl.pallas_call(
        _sinusoidal_kernel,
        out_shape=jax.ShapeDtypeStruct((total, d_pad), out_dtype),
        grid_spec=pltpu.PrefetchScalarGridSpec(
            num_scalar_prefetch=0,
            grid=grid,
            in_specs=[
                pl.BlockSpec((ts_rows, 1), lambda i: (i, 0)),     # timestamps tile (sublane rows)
                pl.BlockSpec((1, d_pad), lambda i: (0, 0)),       # resident div_term
                pl.BlockSpec((1, d_pad), lambda i: (0, 0)),       # resident phase
            ],
            out_specs=pl.BlockSpec((ts_rows, d_pad), lambda i: (i, 0)),
        ),
        compiler_params=pltpu.CompilerParams(
            dimension_semantics=("parallel",),
            vmem_limit_bytes=vmem_limit,
        ),
    )(ts_flat, div_full, phase)

    out = out.reshape(batch, seq_len, d_pad)
    if d_pad != d_model:
        out = out[..., :d_model]
    return out


def _reference(timestamps: jax.Array, d_model: int) -> jax.Array:
    """Pure-JAX reference mirroring the PyTorch module exactly."""
    pos = timestamps.astype(jnp.float32)[:, :, None]                      # (B, S, 1)
    div_term = jnp.exp(
        jnp.arange(0, d_model, 2, dtype=jnp.float32) * -(math.log(10000.0) / d_model)
    )                                                                     # (D/2,)
    emb = jnp.zeros((timestamps.shape[0], timestamps.shape[1], d_model), jnp.float32)
    emb = emb.at[:, :, 0::2].set(jnp.sin(pos * div_term))
    emb = emb.at[:, :, 1::2].set(jnp.cos(pos * div_term))
    return emb


if __name__ == "__main__":
    batch, seq_len, d_model = 2, 16, 128   # d_model multiple of 128 -> lane-dense stores

    key = jax.random.PRNGKey(0)
    max_ts = 1000
    timestamps = jax.random.randint(
        key, (batch, seq_len), minval=0, maxval=max_ts, dtype=jnp.int32
    )

    out = jax.block_until_ready(sinusoidal_embedding(timestamps, d_model))
    ref = _reference(timestamps, d_model)

    assert out.shape == (batch, seq_len, d_model)
    assert out.dtype == jnp.float32
    # cos(x) == sin(x + pi/2): rounding (x + pi/2) in f32 perturbs the argument by <= ~1 ulp(x),
    # so achievable agreement with the jnp.cos reference scales with the angle magnitude
    # (same order as the module's own f32 rounding for large integer timestamps).
    atol = max(1e-5, 4.0 * 1.2e-7 * float(max_ts))
    assert jnp.allclose(out, ref, atol=atol, rtol=0.0), "mismatch vs reference"

    print("KERNEL_OK")
</pallas_src>

<mosaic_0001>
module attributes {stable_mosaic.version = 11 : i64} {
  func.func @_sinusoidal_kernel(%arg0: i32, %arg1: memref<16x1xi32, #tpu.memory_space<vmem>>, %arg2: memref<1x128xf32, #tpu.memory_space<vmem>>, %arg3: memref<1x128xf32, #tpu.memory_space<vmem>>, %arg4: memref<16x128xf32, #tpu.memory_space<vmem>>) attributes {dimension_semantics = [#tpu.dimension_semantics<parallel>], iteration_bounds = array<i64: 2>, scalar_prefetch = 0 : i64, scratch_operands = 0 : i64, tpu.core_type = #tpu.core_type<tc>, window_params = [{transform_indices = @transform_0, window_bounds = array<i64: 16, 1>}, {pipeline_mode = #tpu.pipeline_mode<synchronous>, transform_indices = @transform_1, window_bounds = array<i64: 1, 128>}, {pipeline_mode = #tpu.pipeline_mode<synchronous>, transform_indices = @transform_2, window_bounds = array<i64: 1, 128>}, {transform_indices = @transform_3, window_bounds = array<i64: 16, 128>}]} {
    %c0 = arith.constant 0 : index
    %c0_0 = arith.constant 0 : index
    %0 = vector.load %arg1[%c0, %c0_0] : memref<16x1xi32, #tpu.memory_space<vmem>>, vector<16x1xi32>
    %1 = arith.sitofp %0 : vector<16x1xi32> to vector<16x1xf32>
    %c0_1 = arith.constant 0 : index
    %c0_2 = arith.constant 0 : index
    %2 = vector.load %arg2[%c0_1, %c0_2] : memref<1x128xf32, #tpu.memory_space<vmem>>, vector<1x128xf32>
    %3 = vector.broadcast %1 : vector<16x1xf32> to vector<16x128xf32>
    %4 = vector.broadcast %2 : vector<1x128xf32> to vector<16x128xf32>
    %5 = arith.mulf %3, %4 : vector<16x128xf32>
    %c0_3 = arith.constant 0 : index
    %c0_4 = arith.constant 0 : index
    %6 = vector.load %arg3[%c0_3, %c0_4] : memref<1x128xf32, #tpu.memory_space<vmem>>, vector<1x128xf32>
    %7 = vector.broadcast %6 : vector<1x128xf32> to vector<16x128xf32>
    %8 = arith.addf %5, %7 : vector<16x128xf32>
    %9 = math.sin %8 : vector<16x128xf32>
    %c0_5 = arith.constant 0 : index
    %c0_6 = arith.constant 0 : index
    %10 = vector.load %arg4[%c0_5, %c0_6] : memref<16x128xf32, #tpu.memory_space<vmem>>, vector<16x128xf32>
    tpu.vector_store %arg4[%c0_5, %c0_6], %9 {strides = array<i32>} : memref<16x128xf32, #tpu.memory_space<vmem>>, vector<16x128xf32>,
    return
  }
  func.func @transform_0(%arg0: i32) -> (i32, i32) {
    %c0_i32 = arith.constant 0 : i32
    %c0_i32_0 = arith.constant 0 : i32
    return %arg0, %c0_i32 : i32, i32
  }
  func.func @transform_1(%arg0: i32) -> (i32, i32) {
    %c0_i32 = arith.constant 0 : i32
    %c0_i32_0 = arith.constant 0 : i32
    %c0_i32_1 = arith.constant 0 : i32
    return %c0_i32, %c0_i32_0 : i32, i32
  }
  func.func @transform_2(%arg0: i32) -> (i32, i32) {
    %c0_i32 = arith.constant 0 : i32
    %c0_i32_0 = arith.constant 0 : i32
    %c0_i32_1 = arith.constant 0 : i32
    return %c0_i32, %c0_i32_0 : i32, i32
  }
  func.func @transform_3(%arg0: i32) -> (i32, i32) {
    %c0_i32 = arith.constant 0 : i32
    %c0_i32_0 = arith.constant 0 : i32
    return %arg0, %c0_i32 : i32, i32
  }
}

</mosaic_0001>

<llo_original>
// kernel: tpu_custom_call.1
$region0: #{tpu_custom_call.1}
  #allocation0 [shape = 'u32[]', space=smem, size = 0x4, offset = 0x4, fixed_abs, tag = 'smem constant byte address 0x4 - core index']
  #allocation1 [shape = 'u32[144,128]{1,0:T(1,128)}', space=vmem, size = 0x12000, scoped, tag = 'internal scratch']
  %s0 = inlined_call_operand.vmem [shape: s32[32,1], index: 0, kind: input, shape index: {}]
  %s1 = inlined_call_operand.vmem [shape: f32[1,128], index: 1, kind: input, shape index: {}]
  %s2 = inlined_call_operand.vmem [shape: f32[1,128], index: 2, kind: input, shape index: {}]
  %s3 = inlined_call_operand.hbm [shape: f32[32,128], index: 3, kind: output, shape index: {}]
  %s4 = sld [smem:[#allocation0]]
  $region45: #{tpu_custom_call.1} parent=0
    _
  %s6 = ssub.s32 1, %s4
  %s7 = scalar_select 0, %s6, %s4
  $region1: #{tpu_custom_call.1} parent=0
    #allocation2 [shape = 'u8[16384]{0}', space=vmem, size = 0x4000, scoped, tag = 'output window, operand 0']
    #allocation3 [shape = 's32[2]{0}', space=sflag, size = 0x8, scoped, tag = 'scoped memory for tpu_custom_call.1']
    %8 = vsyncpa [#allocation3], 0
    %s9 = scalar_lea.sflag [#allocation3], 1
    %10 = vsyncpa %s9, 0
    loop: start=0, step=1, limit=4
    $region2: #{tpu_custom_call.1} parent=1 // loop_pre_header
      _
    $region3: #{tpu_custom_call.1} parent=1 // loop_header
      %s12 = sphi 0, %s16
      %p13 = scmp.ge.s32.totalorder %s12, 4
      %s22 = sphi 0, %s24
      %s25 = sphi 0, %s22
      %s26 = sphi 0, %s25
      %s42 = sphi 0, %s26
      %s46 = sphi 0, %s46
      %s48 = sphi 0, %s46
      %s49 = sphi 0, %s48
      %s63 = sphi 0, %s49
      %s67 = sphi 0, %s67
      %s69 = sphi 0, %s67
      %s70 = sphi 0, %s69
      %s84 = sphi 0, %s70
      %s90 = sphi 0, %s92
      %s93 = sphi 0, %s90
      %s94 = sphi 0, %s93
      %s110 = sphi 0, %s94
    $region4: #{tpu_custom_call.1} parent=1 // loop_header_branch
      %15 = sbr.rel (%p13) target = $region8
    $region5: #{tpu_custom_call.1} parent=1 // loop_body
      %s17 = ssub.s32 %s12, 1
      %s18 = ssub.s32 %s12, 2
      %s19 = sadd.s32 %s12, 1
      %s20 = ssub.s32 %s12, %s19
      %p21 = scmp.eq.s32.totalorder %s20, 0
      %s23 = sadd.s32 %s22, 1
      %s24 = scalar_select %p21, %s22, %s23
      %p27 = pneg %p21
      %p28 = scmp.eq.s32.totalorder %s12, 1
      %p29 = por %p27, %p28
      %p30 = scmp.ne.s32.totalorder %s22, %s25
      %p31 = scmp.eq.s32.totalorder %s12, 0
      %p32 = por %p30, %p31
      %p33 = scmp.ne.s32.totalorder %s22, %s25
      %p34 = scmp.eq.s32.totalorder %s17, 1
      %p35 = por %p33, %p34
      %p36 = scmp.ne.s32.totalorder %s25, %s26
      %p37 = scmp.eq.s32.totalorder %s17, 0
      %p38 = por %p36, %p37
      %p39 = scmp.ne.s32.totalorder %s25, %s26
      %p40 = scmp.eq.s32.totalorder %s18, 1
      %p41 = por %p39, %p40
      %p43 = scmp.ne.s32.totalorder %s26, %s42
      %p44 = scmp.eq.s32.totalorder %s18, 0
      %p45 = por %p43, %p44
      %s47 = sadd.s32 %s46, 1
      %p50 = scmp.eq.s32.totalorder %s12, 1
      %p51 = scmp.ne.s32.totalorder %s46, %s48
      %p52 = scmp.eq.s32.totalorder %s12, 0
      %p53 = por %p51, %p52
      %p54 = scmp.ne.s32.totalorder %s46, %s48
      %p55 = scmp.eq.s32.totalorder %s17, 1
      %p56 = por %p54, %p55
      %p57 = scmp.ne.s32.totalorder %s48, %s49
      %p58 = scmp.eq.s32.totalorder %s17, 0
      %p59 = por %p57, %p58
      %p60 = scmp.ne.s32.totalorder %s48, %s49
      %p61 = scmp.eq.s32.totalorder %s18, 1
      %p62 = por %p60, %p61
      %p64 = scmp.ne.s32.totalorder %s49, %s63
      %p65 = scmp.eq.s32.totalorder %s18, 0
      %p66 = por %p64, %p65
      %s68 = sadd.s32 %s67, 1
      %p71 = scmp.eq.s32.totalorder %s12, 1
      %p72 = scmp.ne.s32.totalorder %s67, %s69
      %p73 = scmp.eq.s32.totalorder %s12, 0
      %p74 = por %p72, %p73
      %p75 = scmp.ne.s32.totalorder %s67, %s69
      %p76 = scmp.eq.s32.totalorder %s17, 1
      %p77 = por %p75, %p76
      %p78 = scmp.ne.s32.totalorder %s69, %s70
      %p79 = scmp.eq.s32.totalorder %s17, 0
      %p80 = por %p78, %p79
      %p81 = scmp.ne.s32.totalorder %s69, %s70
      %p82 = scmp.eq.s32.totalorder %s18, 1
      %p83 = por %p81, %p82
      %p85 = scmp.ne.s32.totalorder %s70, %s84
      %p86 = scmp.eq.s32.totalorder %s18, 0
      %p87 = por %p85, %p86
      %s88 = ssub.s32 %s12, %s19
      %p89 = scmp.eq.s32.totalorder %s88, 0
      %s91 = sadd.s32 %s90, 1
      %s92 = scalar_select %p89, %s90, %s91
      %p95 = pneg %p89
      %p96 = scmp.eq.s32.totalorder %s12, 1
      %p97 = por %p95, %p96
      %p98 = scmp.ne.s32.totalorder %s90, %s93
      %p99 = scmp.eq.s32.totalorder %s12, 0
      %p100 = por %p98, %p99
      %p101 = scmp.ne.s32.totalorder %s90, %s93
      %p102 = scmp.eq.s32.totalorder %s17, 1
      %p103 = por %p101, %p102
      %p104 = scmp.ne.s32.totalorder %s93, %s94
      %p105 = scmp.eq.s32.totalorder %s17, 0
      %p106 = por %p104, %p105
      %p107 = scmp.ne.s32.totalorder %s93, %s94
      %p108 = scmp.eq.s32.totalorder %s18, 1
      %p109 = por %p107, %p108
      %p111 = scmp.ne.s32.totalorder %s94, %s110
      %p112 = scmp.eq.s32.totalorder %s18, 0
      %p113 = por %p111, %p112
      %p114 = scmp.le.s32.totalorder 1, %s12
      %p115 = scmp.lt.s32.totalorder %s12, 3
      %p116 = pnand %p114, %p115
      %p117 = pneg %p116
      // Predicated region
      $region9: #{tpu_custom_call.1} parent=5 // pred_check
        _
      $region10: #{tpu_custom_call.1} parent=5 // pred_check_branch
        %119 = sbr.rel (%p116) target = $region12
      $region11: #{tpu_custom_call.1} parent=5 // pred_region
        %s120 = ssub.s32 %s12, 1
        // Predicated region
        $region13: #{tpu_custom_call.1} parent=11 // pred_check
          %p121 = pneg %p59
        $region14: #{tpu_custom_call.1} parent=11 // pred_check_branch
          %123 = sbr.rel (%p121) target = $region16
        $region15: #{tpu_custom_call.1} parent=11 // pred_region
          _
        $region16: #{tpu_custom_call.1} parent=11 // pred_fallthru
          _
        // Predicated region
        $region17: #{tpu_custom_call.1} parent=11 // pred_check
          %p124 = pneg %p80
        $region18: #{tpu_custom_call.1} parent=11 // pred_check_branch
          %126 = sbr.rel (%p124) target = $region20
        $region19: #{tpu_custom_call.1} parent=11 // pred_region
          _
        $region20: #{tpu_custom_call.1} parent=11 // pred_fallthru
          _
      $region12: #{tpu_custom_call.1} parent=5 // pred_fallthru
        _
      %p127 = scmp.lt.s32.totalorder %s12, 2
      // Predicated region
      $region21: #{tpu_custom_call.1} parent=5 // pred_check
        %p128 = pneg %p127
      $region22: #{tpu_custom_call.1} parent=5 // pred_check_branch
        %130 = sbr.rel (%p128) target = $region24
      $region23: #{tpu_custom_call.1} parent=5 // pred_region
        // Predicated region
        $region25: #{tpu_custom_call.1} parent=23 // pred_check
          %p131 = pneg %p32
        $region26: #{tpu_custom_call.1} parent=23 // pred_check_branch
          %133 = sbr.rel (%p131) target = $region28
        $region27: #{tpu_custom_call.1} parent=23 // pred_region
          %s134 = smul.u32 2, %s12
          %p135 = scmp.lt.s32.totalorder %s134, 3
          %s136 = scalar_select %p135, %s134, 3
          %s137 = smul.addr %s136, 8
          %s138 = scalar_lea.vmem %s0, %s137
          %s139 = smul.u32 2, %s12
        $region28: #{tpu_custom_call.1} parent=23 // pred_fallthru
          _
      $region24: #{tpu_custom_call.1} parent=5 // pred_fallthru
        _
      %p140 = scmp.le.s32.totalorder 1, %s12
      %p141 = scmp.lt.s32.totalorder %s12, 3
      %p142 = pnand %p140, %p141
      %p143 = pneg %p142
      // Predicated region
      $region29: #{tpu_custom_call.1} parent=5 // pred_check
        _
      $region30: #{tpu_custom_call.1} parent=5 // pred_check_branch
        %145 = sbr.rel (%p142) target = $region32
      $region31: #{tpu_custom_call.1} parent=5 // pred_region
        %s146 = ssub.s32 %s12, 1
        %s147 = smul.u32 2, %s17
        %p148 = scmp.lt.s32.totalorder %s147, 3
        %s149 = scalar_select %p148, %s147, 3
        %s150 = smul.addr %s149, 8
        %s151 = scalar_lea.vmem %s0, %s150
        %p152 = pneg %p38
        %p153 = pneg %p35
        %p154 = pneg %p59
        %p155 = pneg %p56
        %p156 = pneg %p80
        %p157 = pneg %p77
        %p158 = pneg %p106
        %p159 = pneg %p103
        %s160 = sand.u32 %s93, 1
        %s161 = scalar_lea.sflag [#allocation3], %s160
        %s162 = sand.u32 %s93, 1
        %s163 = smul.addr %s162, 16
        %s164 = scalar_lea.vmem [#allocation2], %s163
        %s165 = smul.u32 2, %s17
        %p166 = scmp.lt.s32.totalorder %s165, 3
        %s167 = scalar_select %p166, %s165, 3
        %s168 = smul.addr %s167, 8
        %s169 = scalar_lea.vmem %s0, %s168
        %s170 = smul.u32 2, %s17
        %s171 = smul.u32 2, %s17
        %v172 = vld [vmem:[%s169] sm:$0xff]
        %v173 = vld [vmem:[%s169 + $0x8] sm:$0xff]
        %v174 = vcvt.s32.f32 %v172
        %v175 = vcvt.s32.f32 %v173
        %v176 = vld [vmem:[%s1] sm:$0x1]
        %178 = vset.pattern.permute.xlu0 0
        %179 = vperm.xlu0 %178, %v174
        %v180 = vpop.permute.xlu0 %179
        %183 = vset.pattern.permute.xlu0 0
        %184 = vperm.xlu0 %183, %v175
        %v185 = vpop.permute.xlu0 %184
        %v188 = vlaneseq
        %v189 = vshrl.u32 %v188, 7
        %v190 = vsub.s32 0, %v189
        %v191 = vrot.slane %v176, %v190
        %v193 = vmul.f32 %v180, %v191
        %v194 = vmul.f32 %v185, %v191
        %v195 = vld [vmem:[%s2] sm:$0x1]
        %v197 = vlaneseq
        %v198 = vshrl.u32 %v197, 7
        %v199 = vsub.s32 0, %v198
        %v200 = vrot.slane %v195, %v199
        %v202 = vadd.f32 %v193, %v200
        %v203 = vadd.f32 %v194, %v200
        %v204 = vand.u32 2147483647, %v202
        %vm205 = vcmp.le.f32.partialorder %v204, 0.7853982
        %vm206 = vcmp.lt.s32.totalorder %v202, 0
        %v207 = vand.u32 %v202, 2139095040
        %v208 = vshrl.u32 %v207, 23
        %v209 = vsub.s32 %v208, 127
        %v210 = vand.u32 2147483647, %v202
        %v211 = vand.u32 %v210, 8388607
        %v212 = vor.u32 %v211, 8388608
        %v213 = vsub.s32 0, %v212
        %v214 = vadd.s32 %v209, 1
        %vm215 = vcmp.gt.s32.totalorder %v214, 0
        %v216 = vsel %vm215, %v214, 0
        %v217 = vshrl.u32 %v216, 5
        %v218 = vand.u32 %v216, 31
        %v219 = vsub.s32 32, %v218
        %v220 = vshrl.u32 683565275, %v219
        %v221 = vshll.u32 683565275, %v218
        %v222 = vshrl.u32 2475754826, %v219
        %v223 = vor.u32 %v221, %v222
        %v224 = vshll.u32 2475754826, %v218
        %v225 = vshrl.u32 2131351028, %v219
        %v226 = vor.u32 %v224, %v225
        %v227 = vshll.u32 2131351028, %v218
        %v228 = vshrl.u32 2102212464, %v219
        %v229 = vor.u32 %v227, %v228
        %v230 = vshll.u32 2102212464, %v218
        %v231 = vshrl.u32 920167782, %v219
        %v232 = vor.u32 %v230, %v231
        %v233 = vshll.u32 920167782, %v218
        %v234 = vshrl.u32 1326507024, %v219
        %v235 = vor.u32 %v233, %v234
        %vm236 = vcmp.lt.s32.totalorder %v217, 1
        %vm237 = vcmp.lt.s32.totalorder %v217, 2
        %vm238 = vcmp.lt.s32.totalorder %v217, 3
        %vm239 = vcmp.lt.s32.totalorder %v217, 4
        %v240 = vsel %vm236, %v220, %v223
        %v241 = vsel %vm239, %v229, 2102212464
        %v242 = vsel %vm238, %v226, %v241
        %v243 = vsel %vm237, %v240, %v242
        %v244 = vsel %vm236, %v223, %v226
        %v245 = vsel %vm239, %v232, 920167782
        %v246 = vsel %vm238, %v229, %v245
        %v247 = vsel %vm237, %v244, %v246
        %v248 = vsel %vm236, %v226, %v229
        %v249 = vsel %vm239, %v235, 1326507024
        %v250 = vsel %vm238, %v232, %v249
        %v251 = vsel %vm237, %v248, %v250
        %v252 = vshll.u32 %v212, 8
        %v253 = vmul.u32.u64.compose %v252, %v251
        %v254 = vextract.low.u32 %v253
        %v255 = vextract.high.u32 %v253
        %v256 = vmul.u32.u64.compose %v252, %v247
        %v257 = vextract.low.u32 %v256
        %v258 = vextract.high.u32 %v256
        %v259 = vmul.u32 %v252, %v243
        %v260 = vadd.s32 %v255, %v257
        %vm261 = vc.u32 %v255, %v257
        %v262 = vadd.s32 %v258, 1
        %v263 = vsel %vm261, %v262, %v258
        %v264 = vadd.s32 %v259, %v263
        %v265 = vadd.s32 %v264, 536870912
        %v266 = vshrl.u32 %v265, 30
        %v267 = vshll.u32 %v266, 30
        %v268 = vsub.s32 %v264, %v267
        %vm269 = vcmp.lt.s32.totalorder %v268, 0
        %v270 = vsub.s32 0, %v268
        %v271 = vsel %vm269, %v270, %v268
        %v272 = vclz %v271
        %v273 = vsub.s32 %v272, 2
        %vm274 = vcmp.gt.s32.totalorder 0, %v273
        %v275 = vsel %vm274, 0, %v273
        %v276 = vsub.s32 32, %v275
        %v277 = vshll.u32 %v268, %v275
        %v278 = vshrl.u32 %v260, %v276
        %v279 = vor.u32 %v277, %v278
        %v280 = vsub.s32 4294967266, %v275
        %v281 = vadd.s32 %v280, 127
        %v282 = vshll.u32 %v281, 23
        %v283 = vor.u32 4788187, %v282
        %v284 = vand.u32 2147483647, %v283
        %v286 = vcvt.s32.f32 %v279
        %v287 = vmul.f32 %v286, %v284
        %v288 = vxor.u32 %v287, 2147483648
        %v289 = vsel %vm206, %v288, %v287
        %v290 = vsub.s32 4, %v266
        %v291 = vsel %vm206, %v290, %v266
        %v292 = vsel %vm205, %v202, %v289
        %v293 = vsel %vm205, 0, %v291
        %v294 = vcosq.f32.pop %v292
        %v295 = vsinq.f32.pop %v292
        %vm296 = vweird.f32 %v202
        %v297 = vadd.s32 %v293, 3
        %v298 = vand.u32 %v297, 3
        %vm299 = vcmp.lt.s32.totalorder %v298, 2
        %vm300 = vcmp.eq.s32.totalorder %v298, 0
        %v301 = vxor.u32 %v295, 2147483648
        %v302 = vsel %vm300, %v294, %v301
        %vm303 = vcmp.eq.s32.totalorder %v298, 2
        %v304 = vxor.u32 %v294, 2147483648
        %v305 = vsel %vm303, %v304, %v295
        %v306 = vsel %vm299, %v302, %v305
        %v307 = vsel %vm296, nan, %v306
        %v308 = vand.u32 2147483647, %v203
        %vm309 = vcmp.le.f32.partialorder %v308, 0.7853982
        %vm310 = vcmp.lt.s32.totalorder %v203, 0
        %v311 = vand.u32 %v203, 2139095040
        %v312 = vshrl.u32 %v311, 23
        %v313 = vsub.s32 %v312, 127
        %v314 = vand.u32 2147483647, %v203
        %v315 = vand.u32 %v314, 8388607
        %v316 = vor.u32 %v315, 8388608
        %v317 = vsub.s32 0, %v316
        %v318 = vadd.s32 %v313, 1
        %vm319 = vcmp.gt.s32.totalorder %v318, 0
        %v320 = vsel %vm319, %v318, 0
        %v321 = vshrl.u32 %v320, 5
        %v322 = vand.u32 %v320, 31
        %v323 = vsub.s32 32, %v322
        %v324 = vshrl.u32 683565275, %v323
        %v325 = vshll.u32 683565275, %v322
        %v326 = vshrl.u32 2475754826, %v323
        %v327 = vor.u32 %v325, %v326
        %v328 = vshll.u32 2475754826, %v322
        %v329 = vshrl.u32 2131351028, %v323
        %v330 = vor.u32 %v328, %v329
        %v331 = vshll.u32 2131351028, %v322
        %v332 = vshrl.u32 2102212464, %v323
        %v333 = vor.u32 %v331, %v332
        %v334 = vshll.u32 2102212464, %v322
        %v335 = vshrl.u32 920167782, %v323
        %v336 = vor.u32 %v334, %v335
        %v337 = vshll.u32 920167782, %v322
        %v338 = vshrl.u32 1326507024, %v323
        %v339 = vor.u32 %v337, %v338
        %vm340 = vcmp.lt.s32.totalorder %v321, 1
        %vm341 = vcmp.lt.s32.totalorder %v321, 2
        %vm342 = vcmp.lt.s32.totalorder %v321, 3
        %vm343 = vcmp.lt.s32.totalorder %v321, 4
        %v344 = vsel %vm340, %v324, %v327
        %v345 = vsel %vm343, %v333, 2102212464
        %v346 = vsel %vm342, %v330, %v345
        %v347 = vsel %vm341, %v344, %v346
        %v348 = vsel %vm340, %v327, %v330
        %v349 = vsel %vm343, %v336, 920167782
        %v350 = vsel %vm342, %v333, %v349
        %v351 = vsel %vm341, %v348, %v350
        %v352 = vsel %vm340, %v330, %v333
        %v353 = vsel %vm343, %v339, 1326507024
        %v354 = vsel %vm342, %v336, %v353
        %v355 = vsel %vm341, %v352, %v354
        %v356 = vshll.u32 %v316, 8
        %v357 = vmul.u32.u64.compose %v356, %v355
        %v358 = vextract.low.u32 %v357
        %v359 = vextract.high.u32 %v357
        %v360 = vmul.u32.u64.compose %v356, %v351
        %v361 = vextract.low.u32 %v360
        %v362 = vextract.high.u32 %v360
        %v363 = vmul.u32 %v356, %v347
        %v364 = vadd.s32 %v359, %v361
        %vm365 = vc.u32 %v359, %v361
        %v366 = vadd.s32 %v362, 1
        %v367 = vsel %vm365, %v366, %v362
        %v368 = vadd.s32 %v363, %v367
        %v369 = vadd.s32 %v368, 536870912
        %v370 = vshrl.u32 %v369, 30
        %v371 = vshll.u32 %v370, 30
        %v372 = vsub.s32 %v368, %v371
        %vm373 = vcmp.lt.s32.totalorder %v372, 0
        %v374 = vsub.s32 0, %v372
        %v375 = vsel %vm373, %v374, %v372
        %v376 = vclz %v375
        %v377 = vsub.s32 %v376, 2
        %vm378 = vcmp.gt.s32.totalorder 0, %v377
        %v379 = vsel %vm378, 0, %v377
        %v380 = vsub.s32 32, %v379
        %v381 = vshll.u32 %v372, %v379
        %v382 = vshrl.u32 %v364, %v380
        %v383 = vor.u32 %v381, %v382
        %v384 = vsub.s32 4294967266, %v379
        %v385 = vadd.s32 %v384, 127
        %v386 = vshll.u32 %v385, 23
        %v387 = vor.u32 4788187, %v386
        %v388 = vand.u32 2147483647, %v387
        %v390 = vcvt.s32.f32 %v383
        %v391 = vmul.f32 %v390, %v388
        %v392 = vxor.u32 %v391, 2147483648
        %v393 = vsel %vm310, %v392, %v391
        %v394 = vsub.s32 4, %v370
        %v395 = vsel %vm310, %v394, %v370
        %v396 = vsel %vm309, %v203, %v393
        %v397 = vsel %vm309, 0, %v395
        %v398 = vcosq.f32.pop %v396
        %v399 = vsinq.f32.pop %v396
        %vm400 = vweird.f32 %v203
        %v401 = vadd.s32 %v397, 3
        %v402 = vand.u32 %v401, 3
        %vm403 = vcmp.lt.s32.totalorder %v402, 2
        %vm404 = vcmp.eq.s32.totalorder %v402, 0
        %v405 = vxor.u32 %v399, 2147483648
        %v406 = vsel %vm404, %v398, %v405
        %vm407 = vcmp.eq.s32.totalorder %v402, 2
        %v408 = vxor.u32 %v398, 2147483648
        %v409 = vsel %vm407, %v408, %v399
        %v410 = vsel %vm403, %v406, %v409
        %v411 = vsel %vm400, nan, %v410
        %412 = vst [vmem:[%s164] sm:$0xff] %v307
        %413 = vst [vmem:[%s164 + $0x8] sm:$0xff] %v411
        %s414 = sand.u32 %s93, 1
        %s415 = scalar_lea.sflag [#allocation3], %s414
        %s416 = sand.u32 %s93, 1
        %s417 = smul.addr %s416, 16
        %s418 = scalar_lea.vmem [#allocation2], %s417
        // Predicated region
        $region33: #{tpu_custom_call.1} parent=31 // pred_check
          %p419 = pneg %p103
        $region34: #{tpu_custom_call.1} parent=31 // pred_check_branch
          %421 = sbr.rel (%p419) target = $region36
        $region35: #{tpu_custom_call.1} parent=31 // pred_region
          %s422 = smul.u32 2, %s17
          %s424 = ssub.s32 256, 256
          %425 = vsyncadd %s415, %s424
          %s426 = smul.addr %s422, 128
          %s427 = scalar_lea.hbm %s3, %s426
          %s428 = sshll.u32 %s418, 4
          %s429 = int_to_ptr.vmem [resolvable:$true] %s428
          %434 = dma.vmem_to_hbm [thread:$0]  %s429, 256, %s427, %s415, 128, 128, 8
        $region36: #{tpu_custom_call.1} parent=31 // pred_fallthru
          _
      $region32: #{tpu_custom_call.1} parent=5 // pred_fallthru
        _
      %p435 = scmp.le.s32.totalorder 2, %s12
      // Predicated region
      $region37: #{tpu_custom_call.1} parent=5 // pred_check
        %p436 = pneg %p435
      $region38: #{tpu_custom_call.1} parent=5 // pred_check_branch
        %438 = sbr.rel (%p436) target = $region40
      $region39: #{tpu_custom_call.1} parent=5 // pred_region
        %s439 = ssub.s32 %s12, 2
        // Predicated region
        $region41: #{tpu_custom_call.1} parent=39 // pred_check
          %p440 = pneg %p109
        $region42: #{tpu_custom_call.1} parent=39 // pred_check_branch
          %442 = sbr.rel (%p440) target = $region44
        $region43: #{tpu_custom_call.1} parent=39 // pred_region
          %s443 = sand.u32 %s94, 1
          %s444 = scalar_lea.sflag [#allocation3], %s443
          %s445 = sand.u32 %s94, 1
          %s446 = smul.addr %s445, 16
          %s447 = scalar_lea.vmem [#allocation2], %s446
          %448 = dma.done %s444, 256
        $region44: #{tpu_custom_call.1} parent=39 // pred_fallthru
          _
      $region40: #{tpu_custom_call.1} parent=5 // pred_fallthru
        _
    $region6: #{tpu_custom_call.1} parent=1 // loop_footer
      %s16 = sadd.s32 1, %s12
    $region7: #{tpu_custom_call.1} parent=1 // loop_footer_branch
      %11 = sbr.rel target = $region3
    $region8: #{tpu_custom_call.1} parent=1 // loop_exit
      _
    %449 = vsyncpa [#allocation3], 1
    %s450 = scalar_lea.sflag [#allocation3], 1
    %451 = vsyncpa %s450, 1

</llo_original>
